<compile_context>
chip_gen: v6e
topology: v6e:2x2x1
jax: 0.10.0
libtpu: 0.0.40
codegen_flags: <defaults>
</compile_context>

<pallas_src>
import jax
import jax.numpy as jnp
from jax.experimental import pallas as pl
from jax.experimental.pallas import tpu as pltpu

EPS = 1e-5
EXPANSION = 4
LANE = 128
VMEM_LIMIT = 32 * 1024 * 1024


# ------------------------------- helpers ------------------------------------

def _rup(x, m):
    return (x + m - 1) // m * m


def _pad_last(a, target):
    pad = target - a.shape[-1]
    if pad == 0:
        return a
    cfg = [(0, 0)] * (a.ndim - 1) + [(0, pad)]
    return jnp.pad(a, cfg)


def _pad_last2(a, t0, t1):
    p0 = t0 - a.shape[-2]
    p1 = t1 - a.shape[-1]
    if p0 == 0 and p1 == 0:
        return a
    cfg = [(0, 0)] * (a.ndim - 2) + [(0, p0), (0, p1)]
    return jnp.pad(a, cfg)


def _fold_bn(s, ss, count, gamma_p, beta_p):
    # Single-pass stats: var = E[x^2] - E[x]^2 (biased).  Fold into scale/shift.
    mu = s / count
    var = jnp.maximum(ss / count - mu * mu, 0.0)
    inv = jax.lax.rsqrt(var + EPS)
    scale = gamma_p * inv
    shift = beta_p - mu * scale
    return scale, shift


# ----------------------------- Pallas kernels --------------------------------

def _colstats_kernel(x_ref, s_ref, ss_ref):
    # per-channel sum / sum-of-squares, accumulated across the grid (for bn1)
    @pl.when(pl.program_id(0) == 0)
    def _():
        s_ref[...] = jnp.zeros_like(s_ref)
        ss_ref[...] = jnp.zeros_like(ss_ref)
    x = x_ref[...]
    s_ref[...] += jnp.sum(x, axis=0, keepdims=True)
    ss_ref[...] += jnp.sum(x * x, axis=0, keepdims=True)


def _stage1_proj_kernel(x_ref, sc1_ref, sh1_ref, w1_ref, wsc_ref,
                        t1_ref, sc_ref, s2_ref, ss2_ref):
    # pre = relu(bn1(x)) (kept in VMEM only); t1 = pre @ w1; shortcut = pre @ wsc;
    # accumulate bn2 batch statistics of t1.
    @pl.when(pl.program_id(0) == 0)
    def _():
        s2_ref[...] = jnp.zeros_like(s2_ref)
        ss2_ref[...] = jnp.zeros_like(ss2_ref)
    pre = jnp.maximum(x_ref[...] * sc1_ref[...] + sh1_ref[...], 0.0)
    t1 = jnp.dot(pre, w1_ref[...], preferred_element_type=jnp.float32)
    t1_ref[...] = t1
    sc_ref[...] = jnp.dot(pre, wsc_ref[...], preferred_element_type=jnp.float32)
    s2_ref[...] += jnp.sum(t1, axis=0, keepdims=True)
    ss2_ref[...] += jnp.sum(t1 * t1, axis=0, keepdims=True)


def _stage1_ident_kernel(x_ref, sc1_ref, sh1_ref, w1_ref,
                         t1_ref, s2_ref, ss2_ref):
    # identity-shortcut variant: no `pre` HBM writeback, no projection matmul
    @pl.when(pl.program_id(0) == 0)
    def _():
        s2_ref[...] = jnp.zeros_like(s2_ref)
        ss2_ref[...] = jnp.zeros_like(ss2_ref)
    pre = jnp.maximum(x_ref[...] * sc1_ref[...] + sh1_ref[...], 0.0)
    t1 = jnp.dot(pre, w1_ref[...], preferred_element_type=jnp.float32)
    t1_ref[...] = t1
    s2_ref[...] += jnp.sum(t1, axis=0, keepdims=True)
    ss2_ref[...] += jnp.sum(t1 * t1, axis=0, keepdims=True)


def _make_conv2_kernel(H, W, Ho, Wo, stride):
    # h = relu(bn2(t1)); 3x3 conv (pad=1, stride) as 9 accumulated tap matmuls from a
    # zero-padded VMEM scratch tile (no HBM im2col); accumulate bn3 stats of the result.
    def kernel(t1_ref, sc2_ref, sh2_ref, w2_ref, t2_ref, s3_ref, ss3_ref, hpad_ref):
        Pp = t1_ref.shape[-1]

        @pl.when(pl.program_id(0) == 0)
        def _():
            s3_ref[...] = jnp.zeros_like(s3_ref)
            ss3_ref[...] = jnp.zeros_like(ss3_ref)

        hpad_ref[...] = jnp.zeros_like(hpad_ref)          # zero border (and interior)
        h = jnp.maximum(t1_ref[0] * sc2_ref[...] + sh2_ref[...], 0.0)   # (H, W, Pp)
        hpad_ref[1:H + 1, 1:W + 1, :] = h

        acc = jnp.zeros((Ho * Wo, Pp), jnp.float32)
        for dy in range(3):
            for dx in range(3):
                if stride == 1:
                    tap = hpad_ref[pl.ds(dy, Ho), pl.ds(dx, Wo), :]
                else:
                    tap = hpad_ref[pl.ds(dy, Ho, stride=stride),
                                   pl.ds(dx, Wo, stride=stride), :]
                acc = acc + jnp.dot(tap.reshape(Ho * Wo, Pp), w2_ref[dy * 3 + dx],
                                    preferred_element_type=jnp.float32)
        t2_ref[...] = acc
        s3_ref[...] += jnp.sum(acc, axis=0, keepdims=True)
        ss3_ref[...] += jnp.sum(acc * acc, axis=0, keepdims=True)
    return kernel


def _stage3_kernel(t2_ref, sc3_ref, sh3_ref, w3_ref, short_ref, out_ref):
    # out = relu(bn3(t2)) @ w3 + shortcut
    a = jnp.maximum(t2_ref[...] * sc3_ref[...] + sh3_ref[...], 0.0)
    out_ref[...] = (jnp.dot(a, w3_ref[...], preferred_element_type=jnp.float32)
                    + short_ref[...])


# ------------------------------ wrapper (glue) --------------------------------

def init_params(key, in_planes, planes, stride):
    """Deterministic synthetic parameters. Conv weights stored HWIO."""
    out_planes = EXPANSION * planes
    ks = jax.random.split(key, 10)
    p = dict(
        gamma1=1.0 + 0.1 * jax.random.normal(ks[0], (in_planes,), jnp.float32),
        beta1=0.1 * jax.random.normal(ks[1], (in_planes,), jnp.float32),
        w1=0.1 * jax.random.normal(ks[2], (1, 1, in_planes, planes), jnp.float32),
        gamma2=1.0 + 0.1 * jax.random.normal(ks[3], (planes,), jnp.float32),
        beta2=0.1 * jax.random.normal(ks[4], (planes,), jnp.float32),
        w2=0.1 * jax.random.normal(ks[5], (3, 3, planes, planes), jnp.float32),
        gamma3=1.0 + 0.1 * jax.random.normal(ks[6], (planes,), jnp.float32),
        beta3=0.1 * jax.random.normal(ks[7], (planes,), jnp.float32),
        w3=0.1 * jax.random.normal(ks[8], (1, 1, planes, out_planes), jnp.float32),
    )
    if stride != 1 or in_planes != out_planes:
        p["wsc"] = 0.1 * jax.random.normal(
            ks[9], (1, 1, in_planes, out_planes), jnp.float32)
    return p


def preact_bottleneck_forward(x_nchw, params, stride):
    N, Cin, H, W = x_nchw.shape
    P = params["w1"].shape[-1]
    Cout = EXPANSION * P
    has_proj = "wsc" in params
    Ho = (H - 1) // stride + 1
    Wo = (W - 1) // stride + 1
    HW, HoWo = H * W, Ho * Wo
    rows, rows_o = N * HW, N * HoWo

    # lane-dense channel padding (zeros) so every matmul dim is a multiple of 128
    Cin_p = _rup(Cin, LANE)
    P_p = _rup(P, LANE)
    Cout_p = _rup(Cout, LANE)

    f32 = jnp.float32
    x2 = _pad_last(
        jnp.transpose(x_nchw, (0, 2, 3, 1)).astype(f32).reshape(rows, Cin), Cin_p)

    g1 = _pad_last(params["gamma1"].reshape(1, Cin).astype(f32), Cin_p)
    b1 = _pad_last(params["beta1"].reshape(1, Cin).astype(f32), Cin_p)
    g2 = _pad_last(params["gamma2"].reshape(1, P).astype(f32), P_p)
    b2 = _pad_last(params["beta2"].reshape(1, P).astype(f32), P_p)
    g3 = _pad_last(params["gamma3"].reshape(1, P).astype(f32), P_p)
    b3 = _pad_last(params["beta3"].reshape(1, P).astype(f32), P_p)
    w1 = _pad_last2(params["w1"].reshape(Cin, P).astype(f32), Cin_p, P_p)
    w2 = _pad_last2(params["w2"].reshape(9, P, P).astype(f32), P_p, P_p)
    w3 = _pad_last2(params["w3"].reshape(P, Cout).astype(f32), P_p, Cout_p)

    cp_arb = pltpu.CompilerParams(dimension_semantics=("arbitrary",),
                                  vmem_limit_bytes=VMEM_LIMIT)
    cp_par = pltpu.CompilerParams(dimension_semantics=("parallel",),
                                  vmem_limit_bytes=VMEM_LIMIT)

    # --- kernel A: per-channel sums of x (bn1 batch stats) -------------------
    s1, ss1 = pl.pallas_call(
        _colstats_kernel,
        out_shape=(jax.ShapeDtypeStruct((1, Cin_p), f32),
                   jax.ShapeDtypeStruct((1, Cin_p), f32)),
        grid=(N,),
        in_specs=[pl.BlockSpec((HW, Cin_p), lambda n: (n, 0))],
        out_specs=(pl.BlockSpec((1, Cin_p), lambda n: (0, 0)),
                   pl.BlockSpec((1, Cin_p), lambda n: (0, 0))),
        compiler_params=cp_arb,
    )(x2)
    scale1, shift1 = _fold_bn(s1, ss1, float(rows), g1, b1)

    # --- kernel B: bn1+relu, conv1 (1x1), projection shortcut, bn2 stats -----
    if has_proj:
        wsc = _pad_last2(params["wsc"].reshape(Cin, Cout).astype(f32), Cin_p, Cout_p)
        t1, sc_full, s2, ss2 = pl.pallas_call(
            _stage1_proj_kernel,
            out_shape=(jax.ShapeDtypeStruct((rows, P_p), f32),
                       jax.ShapeDtypeStruct((rows, Cout_p), f32),
                       jax.ShapeDtypeStruct((1, P_p), f32),
                       jax.ShapeDtypeStruct((1, P_p), f32)),
            grid=(N,),
            in_specs=[pl.BlockSpec((HW, Cin_p), lambda n: (n, 0)),
                      pl.BlockSpec((1, Cin_p), lambda n: (0, 0)),
                      pl.BlockSpec((1, Cin_p), lambda n: (0, 0)),
                      pl.BlockSpec((Cin_p, P_p), lambda n: (0, 0)),
                      pl.BlockSpec((Cin_p, Cout_p), lambda n: (0, 0))],
            out_specs=(pl.BlockSpec((HW, P_p), lambda n: (n, 0)),
                       pl.BlockSpec((HW, Cout_p), lambda n: (n, 0)),
                       pl.BlockSpec((1, P_p), lambda n: (0, 0)),
                       pl.BlockSpec((1, P_p), lambda n: (0, 0))),
            compiler_params=cp_arb,
        )(x2, scale1, shift1, w1, wsc)
        if stride == 1:
            shortcut = sc_full
        else:
            shortcut = (sc_full.reshape(N, H, W, Cout_p)[:, ::stride, ::stride, :]
                        .reshape(rows_o, Cout_p))
    else:
        t1, s2, ss2 = pl.pallas_call(
            _stage1_ident_kernel,
            out_shape=(jax.ShapeDtypeStruct((rows, P_p), f32),
                       jax.ShapeDtypeStruct((1, P_p), f32),
                       jax.ShapeDtypeStruct((1, P_p), f32)),
            grid=(N,),
            in_specs=[pl.BlockSpec((HW, Cin_p), lambda n: (n, 0)),
                      pl.BlockSpec((1, Cin_p), lambda n: (0, 0)),
                      pl.BlockSpec((1, Cin_p), lambda n: (0, 0)),
                      pl.BlockSpec((Cin_p, P_p), lambda n: (0, 0))],
            out_specs=(pl.BlockSpec((HW, P_p), lambda n: (n, 0)),
                       pl.BlockSpec((1, P_p), lambda n: (0, 0)),
                       pl.BlockSpec((1, P_p), lambda n: (0, 0))),
            compiler_params=cp_arb,
        )(x2, scale1, shift1, w1)
        shortcut = x2   # identity: stride == 1 and Cin == Cout (same padding too)

    scale2, shift2 = _fold_bn(s2, ss2, float(rows), g2, b2)

    # --- kernel C: bn2+relu, 3x3 conv (in-VMEM taps), bn3 stats --------------
    t1_4d = t1.reshape(N, H, W, P_p)
    t2, s3, ss3 = pl.pallas_call(
        _make_conv2_kernel(H, W, Ho, Wo, stride),
        out_shape=(jax.ShapeDtypeStruct((rows_o, P_p), f32),
                   jax.ShapeDtypeStruct((1, P_p), f32),
                   jax.ShapeDtypeStruct((1, P_p), f32)),
        grid=(N,),
        in_specs=[pl.BlockSpec((1, H, W, P_p), lambda n: (n, 0, 0, 0)),
                  pl.BlockSpec((1, P_p), lambda n: (0, 0)),
                  pl.BlockSpec((1, P_p), lambda n: (0, 0)),
                  pl.BlockSpec((9, P_p, P_p), lambda n: (0, 0, 0))],
        out_specs=(pl.BlockSpec((HoWo, P_p), lambda n: (n, 0)),
                   pl.BlockSpec((1, P_p), lambda n: (0, 0)),
                   pl.BlockSpec((1, P_p), lambda n: (0, 0))),
        scratch_shapes=[pltpu.VMEM((H + 2, W + 2, P_p), f32)],
        compiler_params=cp_arb,
    )(t1_4d, scale2, shift2, w2)

    scale3, shift3 = _fold_bn(s3, ss3, float(rows_o), g3, b3)

    # --- kernel D: bn3+relu, conv3 (1x1), + shortcut (parallel over images) ---
    out = pl.pallas_call(
        _stage3_kernel,
        out_shape=jax.ShapeDtypeStruct((rows_o, Cout_p), f32),
        grid=(N,),
        in_specs=[pl.BlockSpec((HoWo, P_p), lambda n: (n, 0)),
                  pl.BlockSpec((1, P_p), lambda n: (0, 0)),
                  pl.BlockSpec((1, P_p), lambda n: (0, 0)),
                  pl.BlockSpec((P_p, Cout_p), lambda n: (0, 0)),
                  pl.BlockSpec((HoWo, Cout_p), lambda n: (n, 0))],
        out_specs=pl.BlockSpec((HoWo, Cout_p), lambda n: (n, 0)),
        compiler_params=cp_par,
    )(t2, scale3, shift3, w3, shortcut)

    return (out.reshape(N, Ho, Wo, Cout_p)[..., :Cout]
            .transpose(0, 3, 1, 2))   # back to NCHW, drop lane padding


# ------------------------ pure-JAX reference (check) --------------------------

def _reference_forward(x_nchw, params, stride):
    x = jnp.transpose(x_nchw, (0, 2, 3, 1)).astype(jnp.float32)

    def bn(v, g, b):
        mu = jnp.mean(v, axis=(0, 1, 2), keepdims=True)
        var = jnp.mean((v - mu) ** 2, axis=(0, 1, 2), keepdims=True)
        return (v - mu) * jax.lax.rsqrt(var + EPS) * g.reshape(1, 1, 1, -1) \
            + b.reshape(1, 1, 1, -1)

    def conv(v, w, s, pad):
        return jax.lax.conv_general_dilated(
            v, w, (s, s), [(pad, pad), (pad, pad)],
            dimension_numbers=("NHWC", "HWIO", "NHWC"),
            precision=jax.lax.Precision.HIGHEST)

    pre = jax.nn.relu(bn(x, params["gamma1"], params["beta1"]))
    sc = conv(pre, params["wsc"], stride, 0) if "wsc" in params else x
    out = conv(pre, params["w1"], 1, 0)
    out = conv(jax.nn.relu(bn(out, params["gamma2"], params["beta2"])),
               params["w2"], stride, 1)
    out = conv(jax.nn.relu(bn(out, params["gamma3"], params["beta3"])),
               params["w3"], 1, 0)
    return jnp.transpose(out + sc, (0, 3, 1, 2))


if __name__ == "__main__":
    key = jax.random.PRNGKey(0)
    kx, kp1, kp2 = jax.random.split(key, 3)

    # Config A: projection shortcut (in_planes != 4*planes), stride 1
    x_a = jax.random.normal(kx, (2, 16, 16, 16), jnp.float32)      # NCHW
    params_a = init_params(kp1, in_planes=16, planes=8, stride=1)
    out_a = jax.block_until_ready(preact_bottleneck_forward(x_a, params_a, stride=1))
    ref_a = _reference_forward(x_a, params_a, 1)
    assert out_a.shape == (2, 32, 16, 16)
    assert jnp.allclose(out_a, ref_a, atol=2e-2, rtol=2e-2), \
        float(jnp.max(jnp.abs(out_a - ref_a)))

    # Config B: projection shortcut with stride 2
    params_b = init_params(kp2, in_planes=16, planes=8, stride=2)
    out_b = jax.block_until_ready(preact_bottleneck_forward(x_a, params_b, stride=2))
    ref_b = _reference_forward(x_a, params_b, 2)
    assert out_b.shape == (2, 32, 8, 8)
    assert jnp.allclose(out_b, ref_b, atol=2e-2, rtol=2e-2), \
        float(jnp.max(jnp.abs(out_b - ref_b)))

    # Config C: identity shortcut (in_planes == 4*planes, stride 1)
    x_c = jax.random.normal(kx, (2, 32, 16, 16), jnp.float32)
    params_c = init_params(kp1, in_planes=32, planes=8, stride=1)
    out_c = jax.block_until_ready(preact_bottleneck_forward(x_c, params_c, stride=1))
    ref_c = _reference_forward(x_c, params_c, 1)
    assert out_c.shape == (2, 32, 16, 16)
    assert jnp.allclose(out_c, ref_c, atol=2e-2, rtol=2e-2), \
        float(jnp.max(jnp.abs(out_c - ref_c)))

    print("KERNEL_OK")
</pallas_src>

<mosaic_0001>
module attributes {stable_mosaic.version = 11 : i64} {
  func.func @_colstats_kernel(%arg0: i32, %arg1: memref<256x128xf32, #tpu.memory_space<vmem>>, %arg2: memref<1x128xf32, #tpu.memory_space<vmem>>, %arg3: memref<1x128xf32, #tpu.memory_space<vmem>>) attributes {dimension_semantics = [#tpu.dimension_semantics<arbitrary>], iteration_bounds = array<i64: 2>, scalar_prefetch = 0 : i64, scratch_operands = 0 : i64, tpu.core_type = #tpu.core_type<tc>, window_params = [{transform_indices = @transform_0, window_bounds = array<i64: 256, 128>}, {pipeline_mode = #tpu.pipeline_mode<synchronous>, transform_indices = @transform_1, window_bounds = array<i64: 1, 128>}, {pipeline_mode = #tpu.pipeline_mode<synchronous>, transform_indices = @transform_2, window_bounds = array<i64: 1, 128>}]} {
    %c0_i32 = arith.constant 0 : i32
    %0 = arith.cmpi eq, %arg0, %c0_i32 : i32
    %1 = arith.extui %0 : i1 to i32
    %c0_i32_0 = arith.constant 0 : i32
    %2 = arith.cmpi ne, %1, %c0_i32_0 : i32
    scf.if %2 {
      %cst_11 = arith.constant 0.000000e+00 : f32
      %15 = vector.broadcast %cst_11 : f32 to vector<1x128xf32>
      %c0_12 = arith.constant 0 : index
      %c0_13 = arith.constant 0 : index
      %16 = vector.load %arg2[%c0_12, %c0_13] : memref<1x128xf32, #tpu.memory_space<vmem>>, vector<1x128xf32>
      tpu.vector_store %arg2[%c0_12, %c0_13], %15 {strides = array<i32>} : memref<1x128xf32, #tpu.memory_space<vmem>>, vector<1x128xf32>,
      %cst_14 = arith.constant 0.000000e+00 : f32
      %17 = vector.broadcast %cst_14 : f32 to vector<1x128xf32>
      %c0_15 = arith.constant 0 : index
      %c0_16 = arith.constant 0 : index
      %18 = vector.load %arg3[%c0_15, %c0_16] : memref<1x128xf32, #tpu.memory_space<vmem>>, vector<1x128xf32>
      tpu.vector_store %arg3[%c0_15, %c0_16], %17 {strides = array<i32>} : memref<1x128xf32, #tpu.memory_space<vmem>>, vector<1x128xf32>,
    } else {
    }
    %c0 = arith.constant 0 : index
    %c0_1 = arith.constant 0 : index
    %3 = vector.load %arg1[%c0, %c0_1] : memref<256x128xf32, #tpu.memory_space<vmem>>, vector<256x128xf32>
    %c0_2 = arith.constant 0 : index
    %c0_3 = arith.constant 0 : index
    %4 = vector.load %arg2[%c0_2, %c0_3] : memref<1x128xf32, #tpu.memory_space<vmem>>, vector<1x128xf32>
    %cst = arith.constant dense<0.000000e+00> : vector<128xf32>
    %5 = vector.multi_reduction <add>, %3, %cst [0] : vector<256x128xf32> to vector<128xf32>
    %6 = vector.shape_cast %5 : vector<128xf32> to vector<1x128xf32>
    %7 = arith.addf %4, %6 : vector<1x128xf32>
    %c0_4 = arith.constant 0 : index
    %c0_5 = arith.constant 0 : index
    %8 = vector.load %arg2[%c0_4, %c0_5] : memref<1x128xf32, #tpu.memory_space<vmem>>, vector<1x128xf32>
    tpu.vector_store %arg2[%c0_4, %c0_5], %7 {strides = array<i32>} : memref<1x128xf32, #tpu.memory_space<vmem>>, vector<1x128xf32>,
    %c0_6 = arith.constant 0 : index
    %c0_7 = arith.constant 0 : index
    %9 = vector.load %arg3[%c0_6, %c0_7] : memref<1x128xf32, #tpu.memory_space<vmem>>, vector<1x128xf32>
    %10 = arith.mulf %3, %3 : vector<256x128xf32>
    %cst_8 = arith.constant dense<0.000000e+00> : vector<128xf32>
    %11 = vector.multi_reduction <add>, %10, %cst_8 [0] : vector<256x128xf32> to vector<128xf32>
    %12 = vector.shape_cast %11 : vector<128xf32> to vector<1x128xf32>
    %13 = arith.addf %9, %12 : vector<1x128xf32>
    %c0_9 = arith.constant 0 : index
    %c0_10 = arith.constant 0 : index
    %14 = vector.load %arg3[%c0_9, %c0_10] : memref<1x128xf32, #tpu.memory_space<vmem>>, vector<1x128xf32>
    tpu.vector_store %arg3[%c0_9, %c0_10], %13 {strides = array<i32>} : memref<1x128xf32, #tpu.memory_space<vmem>>, vector<1x128xf32>,
    return
  }
  func.func @transform_0(%arg0: i32) -> (i32, i32) {
    %c0_i32 = arith.constant 0 : i32
    %c0_i32_0 = arith.constant 0 : i32
    return %arg0, %c0_i32 : i32, i32
  }
  func.func @transform_1(%arg0: i32) -> (i32, i32) {
    %c0_i32 = arith.constant 0 : i32
    %c0_i32_0 = arith.constant 0 : i32
    %c0_i32_1 = arith.constant 0 : i32
    return %c0_i32, %c0_i32_0 : i32, i32
  }
  func.func @transform_2(%arg0: i32) -> (i32, i32) {
    %c0_i32 = arith.constant 0 : i32
    %c0_i32_0 = arith.constant 0 : i32
    %c0_i32_1 = arith.constant 0 : i32
    return %c0_i32, %c0_i32_0 : i32, i32
  }
}

</mosaic_0001>

<llo_original>
// kernel: tpu_custom_call.1
$region0: #{tpu_custom_call.1}
  #allocation0 [shape = 'u32[]', space=smem, size = 0x4, offset = 0x4, fixed_abs, tag = 'smem constant byte address 0x4 - core index']
  #allocation1 [shape = 'u32[144,128]{1,0:T(1,128)}', space=vmem, size = 0x12000, scoped, tag = 'internal scratch']
  %s0 = inlined_call_operand.hbm [shape: f32[512,128], index: 0, kind: input, shape index: {}]
  %s1 = inlined_call_operand.hbm [shape: f32[1,128], index: 1, kind: output, shape index: {0}]
  %s2 = inlined_call_operand.hbm [shape: f32[1,128], index: 2, kind: output, shape index: {1}]
  %3 = xla_tuple %s1, %s2
  %s4 = sld [smem:[#allocation0]]
  $region53: #{tpu_custom_call.1} parent=0
    _
  %s6 = ssub.s32 1, %s4
  %s7 = scalar_select 0, %s6, %s4
  $region1: #{tpu_custom_call.1} parent=0
    #allocation2 [shape = 'u8[262144]{0}', space=vmem, size = 0x40000, scoped, tag = 'input window, operand 0']
    #allocation3 [shape = 's32[2]{0}', space=sflag, size = 0x8, scoped, tag = 'scoped memory for tpu_custom_call.1']
    #allocation4 [shape = 's32[2]{0}', space=sflag, size = 0x8, scoped, tag = 'scoped memory for tpu_custom_call.1']
    #allocation5 [shape = 'u8[512]{0}', space=vmem, size = 0x400, scoped, tag = 'output window, operand 0, single buffered']
    #allocation6 [shape = 'u8[512]{0}', space=vmem, size = 0x400, scoped, tag = 'output window, operand 1, single buffered']
    #allocation7 [shape = 's32[1]{0}', space=sflag, size = 0x4, scoped, tag = 'scoped memory for tpu_custom_call.1']
    %8 = vsyncpa [#allocation3], 0
    %s9 = scalar_lea.sflag [#allocation3], 1
    %10 = vsyncpa %s9, 0
    %11 = vsyncpa [#allocation4], 0
    %12 = vsyncpa [#allocation7], 0
    loop: start=0, step=1, limit=4
    $region2: #{tpu_custom_call.1} parent=1 // loop_pre_header
      _
    $region3: #{tpu_custom_call.1} parent=1 // loop_header
      %s14 = sphi 0, %s18
      %p15 = scmp.ge.s32.totalorder %s14, 4
      %s24 = sphi 0, %s26
      %s27 = sphi 0, %s24
      %s28 = sphi 0, %s27
      %s44 = sphi 0, %s28
      %s48 = sphi 0, %s48
      %s50 = sphi 0, %s48
      %s51 = sphi 0, %s50
      %s65 = sphi 0, %s51
      %s69 = sphi 0, %s69
      %s71 = sphi 0, %s69
      %s72 = sphi 0, %s71
      %s86 = sphi 0, %s72
    $region4: #{tpu_custom_call.1} parent=1 // loop_header_branch
      %17 = sbr.rel (%p15) target = $region8
    $region5: #{tpu_custom_call.1} parent=1 // loop_body
      %s19 = ssub.s32 %s14, 1
      %s20 = ssub.s32 %s14, 2
      %s21 = sadd.s32 %s14, 1
      %s22 = ssub.s32 %s14, %s21
      %p23 = scmp.eq.s32.totalorder %s22, 0
      %s25 = sadd.s32 %s24, 1
      %s26 = scalar_select %p23, %s24, %s25
      %p29 = pneg %p23
      %p30 = scmp.eq.s32.totalorder %s14, 1
      %p31 = por %p29, %p30
      %p32 = scmp.ne.s32.totalorder %s24, %s27
      %p33 = scmp.eq.s32.totalorder %s14, 0
      %p34 = por %p32, %p33
      %p35 = scmp.ne.s32.totalorder %s24, %s27
      %p36 = scmp.eq.s32.totalorder %s19, 1
      %p37 = por %p35, %p36
      %p38 = scmp.ne.s32.totalorder %s27, %s28
      %p39 = scmp.eq.s32.totalorder %s19, 0
      %p40 = por %p38, %p39
      %p41 = scmp.ne.s32.totalorder %s27, %s28
      %p42 = scmp.eq.s32.totalorder %s20, 1
      %p43 = por %p41, %p42
      %p45 = scmp.ne.s32.totalorder %s28, %s44
      %p46 = scmp.eq.s32.totalorder %s20, 0
      %p47 = por %p45, %p46
      %s49 = sadd.s32 %s48, 1
      %p52 = scmp.eq.s32.totalorder %s14, 1
      %p53 = scmp.ne.s32.totalorder %s48, %s50
      %p54 = scmp.eq.s32.totalorder %s14, 0
      %p55 = por %p53, %p54
      %p56 = scmp.ne.s32.totalorder %s48, %s50
      %p57 = scmp.eq.s32.totalorder %s19, 1
      %p58 = por %p56, %p57
      %p59 = scmp.ne.s32.totalorder %s50, %s51
      %p60 = scmp.eq.s32.totalorder %s19, 0
      %p61 = por %p59, %p60
      %p62 = scmp.ne.s32.totalorder %s50, %s51
      %p63 = scmp.eq.s32.totalorder %s20, 1
      %p64 = por %p62, %p63
      %p66 = scmp.ne.s32.totalorder %s51, %s65
      %p67 = scmp.eq.s32.totalorder %s20, 0
      %p68 = por %p66, %p67
      %s70 = sadd.s32 %s69, 1
      %p73 = scmp.eq.s32.totalorder %s14, 1
      %p74 = scmp.ne.s32.totalorder %s69, %s71
      %p75 = scmp.eq.s32.totalorder %s14, 0
      %p76 = por %p74, %p75
      %p77 = scmp.ne.s32.totalorder %s69, %s71
      %p78 = scmp.eq.s32.totalorder %s19, 1
      %p79 = por %p77, %p78
      %p80 = scmp.ne.s32.totalorder %s71, %s72
      %p81 = scmp.eq.s32.totalorder %s19, 0
      %p82 = por %p80, %p81
      %p83 = scmp.ne.s32.totalorder %s71, %s72
      %p84 = scmp.eq.s32.totalorder %s20, 1
      %p85 = por %p83, %p84
      %p87 = scmp.ne.s32.totalorder %s72, %s86
      %p88 = scmp.eq.s32.totalorder %s20, 0
      %p89 = por %p87, %p88
      %p90 = scmp.le.s32.totalorder 1, %s14
      %p91 = scmp.lt.s32.totalorder %s14, 3
      %p92 = pnand %p90, %p91
      %p93 = pneg %p92
      // Predicated region
      $region9: #{tpu_custom_call.1} parent=5 // pred_check
        _
      $region10: #{tpu_custom_call.1} parent=5 // pred_check_branch
        %95 = sbr.rel (%p92) target = $region12
      $region11: #{tpu_custom_call.1} parent=5 // pred_region
        %s96 = ssub.s32 %s14, 1
      $region12: #{tpu_custom_call.1} parent=5 // pred_fallthru
        _
      %p97 = scmp.lt.s32.totalorder %s14, 2
      // Predicated region
      $region13: #{tpu_custom_call.1} parent=5 // pred_check
        %p98 = pneg %p97
      $region14: #{tpu_custom_call.1} parent=5 // pred_check_branch
        %100 = sbr.rel (%p98) target = $region16
      $region15: #{tpu_custom_call.1} parent=5 // pred_region
        // Predicated region
        $region17: #{tpu_custom_call.1} parent=15 // pred_check
          %p101 = pneg %p34
        $region18: #{tpu_custom_call.1} parent=15 // pred_check_branch
          %103 = sbr.rel (%p101) target = $region20
        $region19: #{tpu_custom_call.1} parent=15 // pred_region
          %s104 = sand.u32 %s24, 1
          %s105 = scalar_lea.sflag [#allocation3], %s104
          %s106 = sand.u32 %s24, 1
          %s107 = smul.addr %s106, 256
          %s108 = scalar_lea.vmem [#allocation2], %s107
          %s109 = smul.u32 32, %s14
          %s111 = ssub.s32 4096, 4096
          %112 = vsyncadd %s105, %s111
          %s113 = smul.addr %s109, 128
          %s114 = scalar_lea.hbm %s0, %s113
          %s115 = sshll.u32 %s108, 4
          %s116 = int_to_ptr.vmem [resolvable:$true] %s115
          %121 = dma.hbm_to_vmem [thread:$0]  %s114, 4096, %s116, %s105, 128, 128, 8
        $region20: #{tpu_custom_call.1} parent=15 // pred_fallthru
          _
      $region16: #{tpu_custom_call.1} parent=5 // pred_fallthru
        _
      %p122 = scmp.le.s32.totalorder 1, %s14
      %p123 = scmp.lt.s32.totalorder %s14, 3
      %p124 = pnand %p122, %p123
      %p125 = pneg %p124
      // Predicated region
      $region21: #{tpu_custom_call.1} parent=5 // pred_check
        _
      $region22: #{tpu_custom_call.1} parent=5 // pred_check_branch
        %127 = sbr.rel (%p124) target = $region24
      $region23: #{tpu_custom_call.1} parent=5 // pred_region
        %s128 = ssub.s32 %s14, 1
        %s129 = sand.u32 %s27, 1
        %s130 = scalar_lea.sflag [#allocation3], %s129
        %s131 = sand.u32 %s27, 1
        %s132 = smul.addr %s131, 256
        %s133 = scalar_lea.vmem [#allocation2], %s132
        // Predicated region
        $region25: #{tpu_custom_call.1} parent=23 // pred_check
          %p134 = pneg %p40
        $region26: #{tpu_custom_call.1} parent=23 // pred_check_branch
          %136 = sbr.rel (%p134) target = $region28
        $region27: #{tpu_custom_call.1} parent=23 // pred_region
          %137 = dma.done %s130, 4096
        $region28: #{tpu_custom_call.1} parent=23 // pred_fallthru
          _
        %s138 = sand.u32 %s27, 1
        %s139 = scalar_lea.sflag [#allocation3], %s138
        %s140 = sand.u32 %s27, 1
        %s141 = smul.addr %s140, 256
        %s142 = scalar_lea.vmem [#allocation2], %s141
        %p143 = pneg %p40
        %p144 = pneg %p37
        %p145 = pneg %p61
        %p146 = pneg %p58
        %p147 = pneg %p82
        %p148 = pneg %p79
        %s149 = smul.u32 32, %s19
        %p150 = scmp.eq.s32.totalorder %s19, 0
        // Predicated region
        $region29: #{tpu_custom_call.1} parent=23 // pred_check
          %p151 = pneg %p150
        $region30: #{tpu_custom_call.1} parent=23 // pred_check_branch
          %153 = sbr.rel (%p151) target = $region32
        $region31: #{tpu_custom_call.1} parent=23 // pred_region
          %154 = vst [vmem:[#allocation5] sm:$0x1] 0.0
          %155 = vst [vmem:[#allocation6] sm:$0x1] 0.0
        $region32: #{tpu_custom_call.1} parent=23 // pred_fallthru
          _
        %v156 = vld [vmem:[%s133] sm:$0xff]
        %v157 = vld [vmem:[%s133 + $0x8] sm:$0xff]
        %v158 = vld [vmem:[%s133 + $0x10] sm:$0xff]
        %v159 = vld [vmem:[%s133 + $0x18] sm:$0xff]
        %v160 = vld [vmem:[%s133 + $0x20] sm:$0xff]
        %v161 = vld [vmem:[%s133 + $0x28] sm:$0xff]
        %v162 = vld [vmem:[%s133 + $0x30] sm:$0xff]
        %v163 = vld [vmem:[%s133 + $0x38] sm:$0xff]
        %v164 = vld [vmem:[%s133 + $0x40] sm:$0xff]
        %v165 = vld [vmem:[%s133 + $0x48] sm:$0xff]
        %v166 = vld [vmem:[%s133 + $0x50] sm:$0xff]
        %v167 = vld [vmem:[%s133 + $0x58] sm:$0xff]
        %v168 = vld [vmem:[%s133 + $0x60] sm:$0xff]
        %v169 = vld [vmem:[%s133 + $0x68] sm:$0xff]
        %v170 = vld [vmem:[%s133 + $0x70] sm:$0xff]
        %v171 = vld [vmem:[%s133 + $0x78] sm:$0xff]
        %v172 = vld [vmem:[%s133 + $0x80] sm:$0xff]
        %v173 = vld [vmem:[%s133 + $0x88] sm:$0xff]
        %v174 = vld [vmem:[%s133 + $0x90] sm:$0xff]
        %v175 = vld [vmem:[%s133 + $0x98] sm:$0xff]
        %v176 = vld [vmem:[%s133 + $0xa0] sm:$0xff]
        %v177 = vld [vmem:[%s133 + $0xa8] sm:$0xff]
        %v178 = vld [vmem:[%s133 + $0xb0] sm:$0xff]
        %v179 = vld [vmem:[%s133 + $0xb8] sm:$0xff]
        %v180 = vld [vmem:[%s133 + $0xc0] sm:$0xff]
        %v181 = vld [vmem:[%s133 + $0xc8] sm:$0xff]
        %v182 = vld [vmem:[%s133 + $0xd0] sm:$0xff]
        %v183 = vld [vmem:[%s133 + $0xd8] sm:$0xff]
        %v184 = vld [vmem:[%s133 + $0xe0] sm:$0xff]
        %v185 = vld [vmem:[%s133 + $0xe8] sm:$0xff]
        %v186 = vld [vmem:[%s133 + $0xf0] sm:$0xff]
        %v187 = vld [vmem:[%s133 + $0xf8] sm:$0xff]
        %v188 = vld [vmem:[#allocation5] sm:$0x1]
        %v189 = vadd.f32 %v156, %v157
        %v190 = vadd.f32 %v189, %v158
        %v191 = vadd.f32 %v190, %v159
        %v192 = vadd.f32 %v191, %v160
        %v193 = vadd.f32 %v192, %v161
        %v194 = vadd.f32 %v193, %v162
        %v195 = vadd.f32 %v194, %v163
        %v196 = vadd.f32 %v195, %v164
        %v197 = vadd.f32 %v196, %v165
        %v198 = vadd.f32 %v197, %v166
        %v199 = vadd.f32 %v198, %v167
        %v200 = vadd.f32 %v199, %v168
        %v201 = vadd.f32 %v200, %v169
        %v202 = vadd.f32 %v201, %v170
        %v203 = vadd.f32 %v202, %v171
        %v204 = vadd.f32 %v203, %v172
        %v205 = vadd.f32 %v204, %v173
        %v206 = vadd.f32 %v205, %v174
        %v207 = vadd.f32 %v206, %v175
        %v208 = vadd.f32 %v207, %v176
        %v209 = vadd.f32 %v208, %v177
        %v210 = vadd.f32 %v209, %v178
        %v211 = vadd.f32 %v210, %v179
        %v212 = vadd.f32 %v211, %v180
        %v213 = vadd.f32 %v212, %v181
        %v214 = vadd.f32 %v213, %v182
        %v215 = vadd.f32 %v214, %v183
        %v216 = vadd.f32 %v215, %v184
        %v217 = vadd.f32 %v216, %v185
        %v218 = vadd.f32 %v217, %v186
        %v219 = vadd.f32 %v218, %v187
        %v220 = vrot.slane %v219, 4
        %v221 = vadd.f32 %v219, %v220
        %v222 = vrot.slane %v221, 2
        %v223 = vadd.f32 %v221, %v222
        %v224 = vrot.slane %v223, 1
        %v225 = vadd.f32 %v223, %v224
        %v226 = vadd.f32 %v188, %v225
        %227 = vst [vmem:[#allocation5] sm:$0x1] %v226
        %v228 = vld [vmem:[#allocation6] sm:$0x1]
        %v229 = vmul.f32 %v156, %v156
        %v230 = vmul.f32 %v157, %v157
        %v231 = vmul.f32 %v158, %v158
        %v232 = vmul.f32 %v159, %v159
        %v233 = vmul.f32 %v160, %v160
        %v234 = vmul.f32 %v161, %v161
        %v235 = vmul.f32 %v162, %v162
        %v236 = vmul.f32 %v163, %v163
        %v237 = vmul.f32 %v164, %v164
        %v238 = vmul.f32 %v165, %v165
        %v239 = vmul.f32 %v166, %v166
        %v240 = vmul.f32 %v167, %v167
        %v241 = vmul.f32 %v168, %v168
        %v242 = vmul.f32 %v169, %v169
        %v243 = vmul.f32 %v170, %v170
        %v244 = vmul.f32 %v171, %v171
        %v245 = vmul.f32 %v172, %v172
        %v246 = vmul.f32 %v173, %v173
        %v247 = vmul.f32 %v174, %v174
        %v248 = vmul.f32 %v175, %v175
        %v249 = vmul.f32 %v176, %v176
        %v250 = vmul.f32 %v177, %v177
        %v251 = vmul.f32 %v178, %v178
        %v252 = vmul.f32 %v179, %v179
        %v253 = vmul.f32 %v180, %v180
        %v254 = vmul.f32 %v181, %v181
        %v255 = vmul.f32 %v182, %v182
        %v256 = vmul.f32 %v183, %v183
        %v257 = vmul.f32 %v184, %v184
        %v258 = vmul.f32 %v185, %v185
        %v259 = vmul.f32 %v186, %v186
        %v260 = vmul.f32 %v187, %v187
        %v261 = vadd.f32 %v229, %v230
        %v262 = vadd.f32 %v261, %v231
        %v263 = vadd.f32 %v262, %v232
        %v264 = vadd.f32 %v263, %v233
        %v265 = vadd.f32 %v264, %v234
        %v266 = vadd.f32 %v265, %v235
        %v267 = vadd.f32 %v266, %v236
        %v268 = vadd.f32 %v267, %v237
        %v269 = vadd.f32 %v268, %v238
        %v270 = vadd.f32 %v269, %v239
        %v271 = vadd.f32 %v270, %v240
        %v272 = vadd.f32 %v271, %v241
        %v273 = vadd.f32 %v272, %v242
        %v274 = vadd.f32 %v273, %v243
        %v275 = vadd.f32 %v274, %v244
        %v276 = vadd.f32 %v275, %v245
        %v277 = vadd.f32 %v276, %v246
        %v278 = vadd.f32 %v277, %v247
        %v279 = vadd.f32 %v278, %v248
        %v280 = vadd.f32 %v279, %v249
        %v281 = vadd.f32 %v280, %v250
        %v282 = vadd.f32 %v281, %v251
        %v283 = vadd.f32 %v282, %v252
        %v284 = vadd.f32 %v283, %v253
        %v285 = vadd.f32 %v284, %v254
        %v286 = vadd.f32 %v285, %v255
        %v287 = vadd.f32 %v286, %v256
        %v288 = vadd.f32 %v287, %v257
        %v289 = vadd.f32 %v288, %v258
        %v290 = vadd.f32 %v289, %v259
        %v291 = vadd.f32 %v290, %v260
        %v292 = vrot.slane %v291, 4
        %v293 = vadd.f32 %v291, %v292
        %v294 = vrot.slane %v293, 2
        %v295 = vadd.f32 %v293, %v294
        %v296 = vrot.slane %v295, 1
        %v297 = vadd.f32 %v295, %v296
        %v298 = vadd.f32 %v228, %v297
        %299 = vst [vmem:[#allocation6] sm:$0x1] %v298
        // Predicated region
        $region33: #{tpu_custom_call.1} parent=23 // pred_check
          %p300 = pneg %p58
        $region34: #{tpu_custom_call.1} parent=23 // pred_check_branch
          %302 = sbr.rel (%p300) target = $region36
        $region35: #{tpu_custom_call.1} parent=23 // pred_region
          %s304 = ssub.s32 16, 16
          %305 = vsyncadd [#allocation4], %s304
          %s307 = sshll.u32 [#allocation5], 4
          %s308 = int_to_ptr.vmem [resolvable:$true] %s307
          %310 = dma.vmem_to_hbm [thread:$0]  %s308, 16, %s1, [#allocation4]
        $region36: #{tpu_custom_call.1} parent=23 // pred_fallthru
          _
        // Predicated region
        $region37: #{tpu_custom_call.1} parent=23 // pred_check
          %p311 = pneg %p79
        $region38: #{tpu_custom_call.1} parent=23 // pred_check_branch
          %313 = sbr.rel (%p311) target = $region40
        $region39: #{tpu_custom_call.1} parent=23 // pred_region
          %s315 = ssub.s32 16, 16
          %316 = vsyncadd [#allocation7], %s315
          %s318 = sshll.u32 [#allocation6], 4
          %s319 = int_to_ptr.vmem [resolvable:$true] %s318
          %321 = dma.vmem_to_hbm [thread:$0]  %s319, 16, %s2, [#allocation7]
        $region40: #{tpu_custom_call.1} parent=23 // pred_fallthru
          _
        // Predicated region
        $region41: #{tpu_custom_call.1} parent=23 // pred_check
          %p322 = pneg %p58
        $region42: #{tpu_custom_call.1} parent=23 // pred_check_branch
          %324 = sbr.rel (%p322) target = $region44
        $region43: #{tpu_custom_call.1} parent=23 // pred_region
          %325 = dma.done [#allocation4], 16
        $region44: #{tpu_custom_call.1} parent=23 // pred_fallthru
          _
        // Predicated region
        $region45: #{tpu_custom_call.1} parent=23 // pred_check
          %p326 = pneg %p79
        $region46: #{tpu_custom_call.1} parent=23 // pred_check_branch
          %328 = sbr.rel (%p326) target = $region48
        $region47: #{tpu_custom_call.1} parent=23 // pred_region
          %329 = dma.done [#allocation7], 16
        $region48: #{tpu_custom_call.1} parent=23 // pred_fallthru
          _
      $region24: #{tpu_custom_call.1} parent=5 // pred_fallthru
        _
      %p330 = scmp.le.s32.totalorder 2, %s14
      // Predicated region
      $region49: #{tpu_custom_call.1} parent=5 // pred_check
        %p331 = pneg %p330
      $region50: #{tpu_custom_call.1} parent=5 // pred_check_branch
        %333 = sbr.rel (%p331) target = $region52
      $region51: #{tpu_custom_call.1} parent=5 // pred_region
        %s334 = ssub.s32 %s14, 2
      $region52: #{tpu_custom_call.1} parent=5 // pred_fallthru
        _
    $region6: #{tpu_custom_call.1} parent=1 // loop_footer
      %s18 = sadd.s32 1, %s14
    $region7: #{tpu_custom_call.1} parent=1 // loop_footer_branch
      %13 = sbr.rel target = $region3
    $region8: #{tpu_custom_call.1} parent=1 // loop_exit
      _
    %335 = vsyncpa [#allocation3], 1
    %s336 = scalar_lea.sflag [#allocation3], 1
    %337 = vsyncpa %s336, 1
    %338 = vsyncpa [#allocation4], 1
    %s339 = scalar_lea.sflag [#allocation4], 1
    %340 = vsyncpa %s339, 1
    %341 = vsyncpa [#allocation7], 1

</llo_original>
